<compile_context>
chip_gen: v6e
topology: v6e:2x2x1
jax: 0.10.0
libtpu: 0.0.40
codegen_flags: <defaults>
</compile_context>

<pallas_src>
import functools

import jax
import jax.numpy as jnp
from jax.experimental import pallas as pl
from jax.experimental.pallas import tpu as pltpu


def _mkmeans_kernel(x_ref, nsq_ref, wt_ref, w_ref, out_ref, lab_ref, *, M, K):
    # x_ref:   (tb, M*D)   lane-dense batch tile (pipelined)
    # nsq_ref: (1,  M*K)   -||center[m,k]||^2, resident
    # wt_ref:  (M*D, M*K)  block-diag with blocks 2*center[m]^T, resident
    # w_ref:   (M*K, M*D)  block-diag with blocks center[m],    resident
    # out_ref: (tb, M*D)
    # lab_ref: (tb, M) int32
    x = x_ref[...]

    # Fused Gram-expansion scores for all M codebooks in one MXU push:
    #   score[b, m*K + k] = 2*<x[b,m,:], c[m,k,:]> - ||c[m,k,:]||^2
    # The ||x||^2 term is constant over k within a codebook, so it cannot
    # change the per-codebook argmax and is dropped (no sqrt / softmax needed:
    # forward value of the straight-through softargmax is exactly y_hard).
    score = jnp.dot(x, wt_ref[...],
                    preferred_element_type=jnp.float32) + nsq_ref[...]  # (tb, M*K)

    # Per-codebook hard assignment; first index wins ties (torch.max behaviour).
    hard = []
    for m in range(M):                       # M is small and static: unrolled
        s = score[:, m * K:(m + 1) * K]                               # (tb, K)
        smax = jnp.max(s, axis=-1, keepdims=True)
        lane = jax.lax.broadcasted_iota(jnp.int32, s.shape, 1)
        idx = jnp.min(jnp.where(s == smax, lane, K),
                      axis=-1, keepdims=True)                         # (tb, 1)
        lab_ref[:, m:m + 1] = idx            # direct masked column store
        hard.append((lane == idx).astype(jnp.float32))
    assign = jnp.concatenate(hard, axis=1)                            # (tb, M*K)

    # One fused (tb, M*K) @ (M*K, M*D) MXU push; lane-dense full-width store.
    out_ref[...] = jnp.dot(assign, w_ref[...],
                           preferred_element_type=jnp.float32).astype(out_ref.dtype)


def _vmem_capacity_bytes():
    try:
        info = pltpu.get_tpu_info()
        for name in ("vmem_capacity_bytes", "vmem_size_bytes", "vmem_bytes"):
            v = getattr(info, name, None)
            if v:
                return int(v)
    except Exception:
        pass
    return 64 << 20  # conservative default (v7x physical VMEM)


def _pick_batch_tile(B, M, K, D, budget_bytes, min_steps=2):
    """Largest batch tile fitting the VMEM budget: multiple of 8 (or the full
    batch), >= min_steps grid steps for megacore/pipelining on large batches,
    preferring a tile that divides B so no host-side pad/slice pass is needed."""
    def rup(v, m):
        return -(-v // m) * m

    MD, MK = M * D, M * K
    # Bytes per batch row: double-buffered x + out tiles, double-buffered
    # (lane-padded) label tile, plus headroom for in-kernel (tb, M*K) temps.
    per_row = 4 * (4 * rup(MD, 128) + 2 * rup(M, 128) + 6 * rup(MK, 128))
    # Resident operands (block-diag codebooks + -||c||^2), with (8,128) padding.
    resident = 4 * (rup(MD, 8) * rup(MK, 128)
                    + rup(MK, 8) * rup(MD, 128)
                    + 8 * rup(MK, 128))
    avail = max(budget_bytes - resident, 8 * per_row)
    tb = max(8, int(avail // per_row) // 8 * 8)

    if B <= 16:
        return B                            # single full-batch tile, no padding
    # keep >= min_steps grid steps so both TCs / the pipeline have work
    cap = max(8, (B // min_steps) // 8 * 8)
    tb = min(tb, cap, rup(B, 8))
    # prefer a tile that exactly divides B (avoids pad + slice HBM passes)
    for cand in range(tb, max(8, tb // 2) - 1, -8):
        if B % cand == 0:
            return cand
    return tb                               # fallback: pad the batch


def mkmeans_nn_forward(x, center, T, vmem_budget_bytes=None):
    """Returns (out, center, label) matching MKmeansNN.forward.

    x: (B, M, D), center: (M, K, D), T: python float > 0.
    out: (B, M, D) float32, label: (B, M, 1) int32.
    """
    if not T > 0:
        raise ValueError("kernel assumes T > 0 (softmax argmax == distance argmin)")
    x = x.astype(jnp.float32)
    center = center.astype(jnp.float32)
    B, M, D = x.shape
    K = center.shape[1]
    MD, MK = M * D, M * K

    cap = _vmem_capacity_bytes()
    budget = vmem_budget_bytes or min((cap * 3) // 8, 96 << 20)  # ~24 MiB v7x, ~48 MiB v5e/v6e
    tb = _pick_batch_tile(B, M, K, D, budget)

    x2 = x.reshape(B, MD)                    # free: contiguous reshape
    Bp = -(-B // tb) * tb
    if Bp != B:                              # rare fallback (divisor search failed)
        x2 = jnp.zeros((Bp, MD), x2.dtype).at[:B].set(x2)

    # Resident operands, built once per call on the XLA side (tiny arrays).
    eye = jnp.eye(M, dtype=jnp.float32)
    wt = jnp.einsum("mn,mdk->mdnk", eye,
                    2.0 * jnp.transpose(center, (0, 2, 1))).reshape(MD, MK)
    w = jnp.einsum("mn,mkd->mknd", eye, center).reshape(MK, MD)
    nsq = -jnp.sum(center * center, axis=-1).reshape(1, MK)

    kernel = functools.partial(_mkmeans_kernel, M=M, K=K)
    out2, label = pl.pallas_call(
        kernel,
        grid=(Bp // tb,),
        out_shape=(
            jax.ShapeDtypeStruct((Bp, MD), jnp.float32),
            jax.ShapeDtypeStruct((Bp, M), jnp.int32),
        ),
        in_specs=[
            pl.BlockSpec((tb, MD), lambda i: (i, 0)),    # x tile (pipelined)
            pl.BlockSpec((1, MK), lambda i: (0, 0)),     # -||c||^2 (resident)
            pl.BlockSpec((MD, MK), lambda i: (0, 0)),    # block-diag 2*c^T (resident)
            pl.BlockSpec((MK, MD), lambda i: (0, 0)),    # block-diag c (resident)
        ],
        out_specs=(
            pl.BlockSpec((tb, MD), lambda i: (i, 0)),
            pl.BlockSpec((tb, M), lambda i: (i, 0)),
        ),
        compiler_params=pltpu.CompilerParams(
            dimension_semantics=("parallel",),           # megacore sharding on v7x
            vmem_limit_bytes=int(min(cap * 3 // 4, 2 * budget)),
        ),
    )(x2, nsq, wt, w)

    out = out2[:B].reshape(B, M, D)
    label = label[:B]
    return out, center, label[..., None]


def _reference(x, center, T):
    """Pure-JAX mirror of the PyTorch forward."""
    x1 = jnp.transpose(x, (1, 2, 0))                                  # (M, D, B)
    x_sqlen = jnp.sum(x1 * x1, axis=1)                                # (M, B)
    dot = jnp.einsum("mkd,mdb->mkb", center, x1,
                     precision=jax.lax.Precision.HIGHEST)             # (M, K, B)
    c_sqlen = jnp.sum(center * center, axis=-1)                       # (M, K)
    dist = c_sqlen[:, :, None] - 2.0 * dot + x_sqlen[:, None, :]
    dist = -jnp.sqrt(jnp.transpose(dist, (2, 0, 1)))                  # (B, M, K)
    y_soft = jax.nn.softmax(dist / T, axis=-1)
    label = jnp.argmax(y_soft, axis=-1, keepdims=True)                # (B, M, 1)
    y_hard = jax.nn.one_hot(label[..., 0], center.shape[1], dtype=y_soft.dtype)
    assign = y_hard - y_soft + y_soft
    out = jnp.einsum("bmk,mkd->bmd", assign, center,
                     precision=jax.lax.Precision.HIGHEST)
    return out, label.astype(jnp.int32)


if __name__ == "__main__":
    B, M, K, D = 24, 4, 16, 32          # M*D = 128 -> lane-dense blocks
    T = 0.1

    key = jax.random.PRNGKey(0)
    kx, kc = jax.random.split(key)
    # Data and codebooks at the same scale (module init: std=0.01) so the
    # reference's Gram expansion is well conditioned and argmax is unambiguous.
    x = 0.01 * jax.random.normal(kx, (B, M, D), dtype=jnp.float32)
    center = 0.01 * jax.random.normal(kc, (M, K, D), dtype=jnp.float32)

    out, center_out, label = mkmeans_nn_forward(x, center, T)
    jax.block_until_ready((out, center_out, label))

    ref_out, ref_label = _reference(x, center, T)
    assert out.shape == (B, M, D) and label.shape == (B, M, 1)
    assert jnp.allclose(out, ref_out, atol=1e-4, rtol=1e-4), \
        float(jnp.max(jnp.abs(out - ref_out)))
    assert jnp.array_equal(label, ref_label)
    assert jnp.array_equal(center_out, center)

    print("KERNEL_OK")
</pallas_src>

<mosaic_0001>
module attributes {stable_mosaic.version = 11 : i64} {
  func.func @_mkmeans_kernel(%arg0: i32, %arg1: memref<8x128xf32, #tpu.memory_space<vmem>>, %arg2: memref<1x64xf32, #tpu.memory_space<vmem>>, %arg3: memref<128x64xf32, #tpu.memory_space<vmem>>, %arg4: memref<64x128xf32, #tpu.memory_space<vmem>>, %arg5: memref<8x128xf32, #tpu.memory_space<vmem>>, %arg6: memref<8x4xi32, #tpu.memory_space<vmem>>) attributes {dimension_semantics = [#tpu.dimension_semantics<parallel>], iteration_bounds = array<i64: 3>, scalar_prefetch = 0 : i64, scratch_operands = 0 : i64, tpu.core_type = #tpu.core_type<tc>, window_params = [{transform_indices = @transform_0, window_bounds = array<i64: 8, 128>}, {pipeline_mode = #tpu.pipeline_mode<synchronous>, transform_indices = @transform_1, window_bounds = array<i64: 1, 64>}, {pipeline_mode = #tpu.pipeline_mode<synchronous>, transform_indices = @transform_2, window_bounds = array<i64: 128, 64>}, {pipeline_mode = #tpu.pipeline_mode<synchronous>, transform_indices = @transform_3, window_bounds = array<i64: 64, 128>}, {transform_indices = @transform_4, window_bounds = array<i64: 8, 128>}, {transform_indices = @transform_5, window_bounds = array<i64: 8, 4>}]} {
    %c0 = arith.constant 0 : index
    %c0_0 = arith.constant 0 : index
    %0 = vector.load %arg1[%c0, %c0_0] : memref<8x128xf32, #tpu.memory_space<vmem>>, vector<8x128xf32>
    %c0_1 = arith.constant 0 : index
    %c0_2 = arith.constant 0 : index
    %1 = vector.load %arg3[%c0_1, %c0_2] : memref<128x64xf32, #tpu.memory_space<vmem>>, vector<128x64xf32>
    %cst = arith.constant dense<0.000000e+00> : vector<8x64xf32>
    %2 = tpu.matmul %0, %1, %cst {dimension_numbers = #tpu.dot_dimension_numbers<[1], [0], [0], [1], [0, 0, 1, 1], [], []>} : vector<8x128xf32>, vector<128x64xf32>, vector<8x64xf32> -> vector<8x64xf32>
    %c0_3 = arith.constant 0 : index
    %c0_4 = arith.constant 0 : index
    %3 = vector.load %arg2[%c0_3, %c0_4] : memref<1x64xf32, #tpu.memory_space<vmem>>, vector<1x64xf32>
    %4 = vector.broadcast %3 : vector<1x64xf32> to vector<8x64xf32>
    %5 = arith.addf %2, %4 : vector<8x64xf32>
    %6 = vector.extract_strided_slice %5 {offsets = [0, 0], sizes = [8, 16], strides = [1, 1]} : vector<8x64xf32> to vector<8x16xf32>
    %cst_5 = arith.constant dense<0xFF800000> : vector<8xf32>
    %7 = vector.multi_reduction <maximumf>, %6, %cst_5 [1] : vector<8x16xf32> to vector<8xf32>
    %8 = vector.shape_cast %7 : vector<8xf32> to vector<8x1xf32>
    %9 = tpu.iota {dimensions = array<i32: 1>} : vector<8x16xi32>
    %10 = vector.broadcast %8 : vector<8x1xf32> to vector<8x16xf32>
    %11 = arith.cmpf oeq, %6, %10 : vector<8x16xf32>
    %c16_i32 = arith.constant 16 : i32
    %12 = vector.broadcast %c16_i32 : i32 to vector<8x16xi32>
    %13 = arith.select %11, %9, %12 : vector<8x16xi1>, vector<8x16xi32>
    %cst_6 = arith.constant dense<2147483647> : vector<8xi32>
    %14 = vector.multi_reduction <minsi>, %13, %cst_6 [1] : vector<8x16xi32> to vector<8xi32>
    %15 = vector.shape_cast %14 : vector<8xi32> to vector<8x1xi32>
    %c0_7 = arith.constant 0 : index
    %c0_8 = arith.constant 0 : index
    %16 = vector.load %arg6[%c0_7, %c0_8] : memref<8x4xi32, #tpu.memory_space<vmem>>, vector<8x1xi32>
    tpu.vector_store %arg6[%c0_7, %c0_8], %15 {strides = array<i32>} : memref<8x4xi32, #tpu.memory_space<vmem>>, vector<8x1xi32>,
    %17 = vector.broadcast %15 : vector<8x1xi32> to vector<8x16xi32>
    %18 = arith.cmpi eq, %9, %17 : vector<8x16xi32>
    %19 = arith.extui %18 : vector<8x16xi1> to vector<8x16xi32>
    %20 = arith.sitofp %19 : vector<8x16xi32> to vector<8x16xf32>
    %21 = vector.extract_strided_slice %5 {offsets = [0, 16], sizes = [8, 16], strides = [1, 1]} : vector<8x64xf32> to vector<8x16xf32>
    %cst_9 = arith.constant dense<0xFF800000> : vector<8xf32>
    %22 = vector.multi_reduction <maximumf>, %21, %cst_9 [1] : vector<8x16xf32> to vector<8xf32>
    %23 = vector.shape_cast %22 : vector<8xf32> to vector<8x1xf32>
    %24 = tpu.iota {dimensions = array<i32: 1>} : vector<8x16xi32>
    %25 = vector.broadcast %23 : vector<8x1xf32> to vector<8x16xf32>
    %26 = arith.cmpf oeq, %21, %25 : vector<8x16xf32>
    %c16_i32_10 = arith.constant 16 : i32
    %27 = vector.broadcast %c16_i32_10 : i32 to vector<8x16xi32>
    %28 = arith.select %26, %24, %27 : vector<8x16xi1>, vector<8x16xi32>
    %cst_11 = arith.constant dense<2147483647> : vector<8xi32>
    %29 = vector.multi_reduction <minsi>, %28, %cst_11 [1] : vector<8x16xi32> to vector<8xi32>
    %30 = vector.shape_cast %29 : vector<8xi32> to vector<8x1xi32>
    %c0_12 = arith.constant 0 : index
    %c1 = arith.constant 1 : index
    %31 = vector.load %arg6[%c0_12, %c1] : memref<8x4xi32, #tpu.memory_space<vmem>>, vector<8x1xi32>
    tpu.vector_store %arg6[%c0_12, %c1], %30 {strides = array<i32>} : memref<8x4xi32, #tpu.memory_space<vmem>>, vector<8x1xi32>,
    %32 = vector.broadcast %30 : vector<8x1xi32> to vector<8x16xi32>
    %33 = arith.cmpi eq, %24, %32 : vector<8x16xi32>
    %34 = arith.extui %33 : vector<8x16xi1> to vector<8x16xi32>
    %35 = arith.sitofp %34 : vector<8x16xi32> to vector<8x16xf32>
    %36 = vector.extract_strided_slice %5 {offsets = [0, 32], sizes = [8, 16], strides = [1, 1]} : vector<8x64xf32> to vector<8x16xf32>
    %cst_13 = arith.constant dense<0xFF800000> : vector<8xf32>
    %37 = vector.multi_reduction <maximumf>, %36, %cst_13 [1] : vector<8x16xf32> to vector<8xf32>
    %38 = vector.shape_cast %37 : vector<8xf32> to vector<8x1xf32>
    %39 = tpu.iota {dimensions = array<i32: 1>} : vector<8x16xi32>
    %40 = vector.broadcast %38 : vector<8x1xf32> to vector<8x16xf32>
    %41 = arith.cmpf oeq, %36, %40 : vector<8x16xf32>
    %c16_i32_14 = arith.constant 16 : i32
    %42 = vector.broadcast %c16_i32_14 : i32 to vector<8x16xi32>
    %43 = arith.select %41, %39, %42 : vector<8x16xi1>, vector<8x16xi32>
    %cst_15 = arith.constant dense<2147483647> : vector<8xi32>
    %44 = vector.multi_reduction <minsi>, %43, %cst_15 [1] : vector<8x16xi32> to vector<8xi32>
    %45 = vector.shape_cast %44 : vector<8xi32> to vector<8x1xi32>
    %c0_16 = arith.constant 0 : index
    %c2 = arith.constant 2 : index
    %46 = vector.load %arg6[%c0_16, %c2] : memref<8x4xi32, #tpu.memory_space<vmem>>, vector<8x1xi32>
    tpu.vector_store %arg6[%c0_16, %c2], %45 {strides = array<i32>} : memref<8x4xi32, #tpu.memory_space<vmem>>, vector<8x1xi32>,
    %47 = vector.broadcast %45 : vector<8x1xi32> to vector<8x16xi32>
    %48 = arith.cmpi eq, %39, %47 : vector<8x16xi32>
    %49 = arith.extui %48 : vector<8x16xi1> to vector<8x16xi32>
    %50 = arith.sitofp %49 : vector<8x16xi32> to vector<8x16xf32>
    %51 = vector.extract_strided_slice %5 {offsets = [0, 48], sizes = [8, 16], strides = [1, 1]} : vector<8x64xf32> to vector<8x16xf32>
    %cst_17 = arith.constant dense<0xFF800000> : vector<8xf32>
    %52 = vector.multi_reduction <maximumf>, %51, %cst_17 [1] : vector<8x16xf32> to vector<8xf32>
    %53 = vector.shape_cast %52 : vector<8xf32> to vector<8x1xf32>
    %54 = tpu.iota {dimensions = array<i32: 1>} : vector<8x16xi32>
    %55 = vector.broadcast %53 : vector<8x1xf32> to vector<8x16xf32>
    %56 = arith.cmpf oeq, %51, %55 : vector<8x16xf32>
    %c16_i32_18 = arith.constant 16 : i32
    %57 = vector.broadcast %c16_i32_18 : i32 to vector<8x16xi32>
    %58 = arith.select %56, %54, %57 : vector<8x16xi1>, vector<8x16xi32>
    %cst_19 = arith.constant dense<2147483647> : vector<8xi32>
    %59 = vector.multi_reduction <minsi>, %58, %cst_19 [1] : vector<8x16xi32> to vector<8xi32>
    %60 = vector.shape_cast %59 : vector<8xi32> to vector<8x1xi32>
    %c0_20 = arith.constant 0 : index
    %c3 = arith.constant 3 : index
    %61 = vector.load %arg6[%c0_20, %c3] : memref<8x4xi32, #tpu.memory_space<vmem>>, vector<8x1xi32>
    tpu.vector_store %arg6[%c0_20, %c3], %60 {strides = array<i32>} : memref<8x4xi32, #tpu.memory_space<vmem>>, vector<8x1xi32>,
    %62 = vector.broadcast %60 : vector<8x1xi32> to vector<8x16xi32>
    %63 = arith.cmpi eq, %54, %62 : vector<8x16xi32>
    %64 = arith.extui %63 : vector<8x16xi1> to vector<8x16xi32>
    %65 = arith.sitofp %64 : vector<8x16xi32> to vector<8x16xf32>
    %66 = tpu.concatenate %20, %35, %50, %65 in 1 : vector<8x16xf32>, vector<8x16xf32>, vector<8x16xf32>, vector<8x16xf32> -> vector<8x64xf32>
    %c0_21 = arith.constant 0 : index
    %c0_22 = arith.constant 0 : index
    %67 = vector.load %arg4[%c0_21, %c0_22] : memref<64x128xf32, #tpu.memory_space<vmem>>, vector<64x128xf32>
    %cst_23 = arith.constant dense<0.000000e+00> : vector<8x128xf32>
    %68 = tpu.matmul %66, %67, %cst_23 {dimension_numbers = #tpu.dot_dimension_numbers<[1], [0], [0], [1], [0, 0, 1, 1], [], []>} : vector<8x64xf32>, vector<64x128xf32>, vector<8x128xf32> -> vector<8x128xf32>
    %c0_24 = arith.constant 0 : index
    %c0_25 = arith.constant 0 : index
    %69 = vector.load %arg5[%c0_24, %c0_25] : memref<8x128xf32, #tpu.memory_space<vmem>>, vector<8x128xf32>
    tpu.vector_store %arg5[%c0_24, %c0_25], %68 {strides = array<i32>} : memref<8x128xf32, #tpu.memory_space<vmem>>, vector<8x128xf32>,
    return
  }
  func.func @transform_0(%arg0: i32) -> (i32, i32) {
    %c0_i32 = arith.constant 0 : i32
    %c0_i32_0 = arith.constant 0 : i32
    return %arg0, %c0_i32 : i32, i32
  }
  func.func @transform_1(%arg0: i32) -> (i32, i32) {
    %c0_i32 = arith.constant 0 : i32
    %c0_i32_0 = arith.constant 0 : i32
    %c0_i32_1 = arith.constant 0 : i32
    return %c0_i32, %c0_i32_0 : i32, i32
  }
  func.func @transform_2(%arg0: i32) -> (i32, i32) {
    %c0_i32 = arith.constant 0 : i32
    %c0_i32_0 = arith.constant 0 : i32
    %c0_i32_1 = arith.constant 0 : i32
    return %c0_i32, %c0_i32_0 : i32, i32
  }
  func.func @transform_3(%arg0: i32) -> (i32, i32) {
    %c0_i32 = arith.constant 0 : i32
    %c0_i32_0 = arith.constant 0 : i32
    %c0_i32_1 = arith.constant 0 : i32
    return %c0_i32, %c0_i32_0 : i32, i32
  }
  func.func @transform_4(%arg0: i32) -> (i32, i32) {
    %c0_i32 = arith.constant 0 : i32
    %c0_i32_0 = arith.constant 0 : i32
    return %arg0, %c0_i32 : i32, i32
  }
  func.func @transform_5(%arg0: i32) -> (i32, i32) {
    %c0_i32 = arith.constant 0 : i32
    %c0_i32_0 = arith.constant 0 : i32
    return %arg0, %c0_i32 : i32, i32
  }
}

</mosaic_0001>

<llo_original>
// kernel: tpu_custom_call.1
$region0: #{tpu_custom_call.1}
  #allocation0 [shape = 'u32[]', space=smem, size = 0x4, offset = 0x4, fixed_abs, tag = 'smem constant byte address 0x4 - core index']
  #allocation1 [shape = 'u32[144,128]{1,0:T(1,128)}', space=vmem, size = 0x12000, scoped, tag = 'internal scratch']
  %s0 = inlined_call_operand.vmem [shape: f32[24,128], index: 0, kind: input, shape index: {}]
  %s1 = inlined_call_operand.vmem [shape: f32[1,64], index: 1, kind: input, shape index: {}]
  %s2 = inlined_call_operand.vmem [shape: f32[128,64], index: 2, kind: input, shape index: {}]
  %s3 = inlined_call_operand.vmem [shape: f32[64,128], index: 3, kind: input, shape index: {}]
  %s4 = inlined_call_operand.hbm [shape: f32[24,128], index: 4, kind: output, shape index: {0}]
  %s5 = inlined_call_operand.vmem [shape: s32[24,4], index: 5, kind: output, shape index: {1}]
  %6 = xla_tuple %s4, %s5
  %s7 = sld [smem:[#allocation0]]
  $region57: #{tpu_custom_call.1} parent=0
    _
  %s9 = ssub.s32 1, %s7
  %s10 = scalar_select 0, %s9, %s7
  $region1: #{tpu_custom_call.1} parent=0
    #allocation2 [shape = 'u8[8192]{0}', space=vmem, size = 0x2000, scoped, tag = 'output window, operand 0']
    #allocation3 [shape = 's32[2]{0}', space=sflag, size = 0x8, scoped, tag = 'scoped memory for tpu_custom_call.1']
    %11 = vsyncpa [#allocation3], 0
    %s12 = scalar_lea.sflag [#allocation3], 1
    %13 = vsyncpa %s12, 0
    loop: start=0, step=1, limit=5
    $region2: #{tpu_custom_call.1} parent=1 // loop_pre_header
      _
    $region3: #{tpu_custom_call.1} parent=1 // loop_header
      %s15 = sphi 0, %s19
      %p16 = scmp.ge.s32.totalorder %s15, 5
      %s25 = sphi 0, %s27
      %s28 = sphi 0, %s25
      %s29 = sphi 0, %s28
      %s45 = sphi 0, %s29
      %s49 = sphi 0, %s49
      %s51 = sphi 0, %s49
      %s52 = sphi 0, %s51
      %s66 = sphi 0, %s52
      %s70 = sphi 0, %s70
      %s72 = sphi 0, %s70
      %s73 = sphi 0, %s72
      %s87 = sphi 0, %s73
      %s91 = sphi 0, %s91
      %s93 = sphi 0, %s91
      %s94 = sphi 0, %s93
      %s108 = sphi 0, %s94
      %s114 = sphi 0, %s116
      %s117 = sphi 0, %s114
      %s118 = sphi 0, %s117
      %s134 = sphi 0, %s118
      %s140 = sphi 0, %s142
      %s143 = sphi 0, %s140
      %s144 = sphi 0, %s143
      %s160 = sphi 0, %s144
    $region4: #{tpu_custom_call.1} parent=1 // loop_header_branch
      %18 = sbr.rel (%p16) target = $region8
    $region5: #{tpu_custom_call.1} parent=1 // loop_body
      %s20 = ssub.s32 %s15, 1
      %s21 = ssub.s32 %s15, 2
      %s22 = sadd.s32 %s15, 1
      %s23 = ssub.s32 %s15, %s22
      %p24 = scmp.eq.s32.totalorder %s23, 0
      %s26 = sadd.s32 %s25, 1
      %s27 = scalar_select %p24, %s25, %s26
      %p30 = pneg %p24
      %p31 = scmp.eq.s32.totalorder %s15, 2
      %p32 = por %p30, %p31
      %p33 = scmp.ne.s32.totalorder %s25, %s28
      %p34 = scmp.eq.s32.totalorder %s15, 0
      %p35 = por %p33, %p34
      %p36 = scmp.ne.s32.totalorder %s25, %s28
      %p37 = scmp.eq.s32.totalorder %s20, 2
      %p38 = por %p36, %p37
      %p39 = scmp.ne.s32.totalorder %s28, %s29
      %p40 = scmp.eq.s32.totalorder %s20, 0
      %p41 = por %p39, %p40
      %p42 = scmp.ne.s32.totalorder %s28, %s29
      %p43 = scmp.eq.s32.totalorder %s21, 2
      %p44 = por %p42, %p43
      %p46 = scmp.ne.s32.totalorder %s29, %s45
      %p47 = scmp.eq.s32.totalorder %s21, 0
      %p48 = por %p46, %p47
      %s50 = sadd.s32 %s49, 1
      %p53 = scmp.eq.s32.totalorder %s15, 2
      %p54 = scmp.ne.s32.totalorder %s49, %s51
      %p55 = scmp.eq.s32.totalorder %s15, 0
      %p56 = por %p54, %p55
      %p57 = scmp.ne.s32.totalorder %s49, %s51
      %p58 = scmp.eq.s32.totalorder %s20, 2
      %p59 = por %p57, %p58
      %p60 = scmp.ne.s32.totalorder %s51, %s52
      %p61 = scmp.eq.s32.totalorder %s20, 0
      %p62 = por %p60, %p61
      %p63 = scmp.ne.s32.totalorder %s51, %s52
      %p64 = scmp.eq.s32.totalorder %s21, 2
      %p65 = por %p63, %p64
      %p67 = scmp.ne.s32.totalorder %s52, %s66
      %p68 = scmp.eq.s32.totalorder %s21, 0
      %p69 = por %p67, %p68
      %s71 = sadd.s32 %s70, 1
      %p74 = scmp.eq.s32.totalorder %s15, 2
      %p75 = scmp.ne.s32.totalorder %s70, %s72
      %p76 = scmp.eq.s32.totalorder %s15, 0
      %p77 = por %p75, %p76
      %p78 = scmp.ne.s32.totalorder %s70, %s72
      %p79 = scmp.eq.s32.totalorder %s20, 2
      %p80 = por %p78, %p79
      %p81 = scmp.ne.s32.totalorder %s72, %s73
      %p82 = scmp.eq.s32.totalorder %s20, 0
      %p83 = por %p81, %p82
      %p84 = scmp.ne.s32.totalorder %s72, %s73
      %p85 = scmp.eq.s32.totalorder %s21, 2
      %p86 = por %p84, %p85
      %p88 = scmp.ne.s32.totalorder %s73, %s87
      %p89 = scmp.eq.s32.totalorder %s21, 0
      %p90 = por %p88, %p89
      %s92 = sadd.s32 %s91, 1
      %p95 = scmp.eq.s32.totalorder %s15, 2
      %p96 = scmp.ne.s32.totalorder %s91, %s93
      %p97 = scmp.eq.s32.totalorder %s15, 0
      %p98 = por %p96, %p97
      %p99 = scmp.ne.s32.totalorder %s91, %s93
      %p100 = scmp.eq.s32.totalorder %s20, 2
      %p101 = por %p99, %p100
      %p102 = scmp.ne.s32.totalorder %s93, %s94
      %p103 = scmp.eq.s32.totalorder %s20, 0
      %p104 = por %p102, %p103
      %p105 = scmp.ne.s32.totalorder %s93, %s94
      %p106 = scmp.eq.s32.totalorder %s21, 2
      %p107 = por %p105, %p106
      %p109 = scmp.ne.s32.totalorder %s94, %s108
      %p110 = scmp.eq.s32.totalorder %s21, 0
      %p111 = por %p109, %p110
      %s112 = ssub.s32 %s15, %s22
      %p113 = scmp.eq.s32.totalorder %s112, 0
      %s115 = sadd.s32 %s114, 1
      %s116 = scalar_select %p113, %s114, %s115
      %p119 = pneg %p113
      %p120 = scmp.eq.s32.totalorder %s15, 2
      %p121 = por %p119, %p120
      %p122 = scmp.ne.s32.totalorder %s114, %s117
      %p123 = scmp.eq.s32.totalorder %s15, 0
      %p124 = por %p122, %p123
      %p125 = scmp.ne.s32.totalorder %s114, %s117
      %p126 = scmp.eq.s32.totalorder %s20, 2
      %p127 = por %p125, %p126
      %p128 = scmp.ne.s32.totalorder %s117, %s118
      %p129 = scmp.eq.s32.totalorder %s20, 0
      %p130 = por %p128, %p129
      %p131 = scmp.ne.s32.totalorder %s117, %s118
      %p132 = scmp.eq.s32.totalorder %s21, 2
      %p133 = por %p131, %p132
      %p135 = scmp.ne.s32.totalorder %s118, %s134
      %p136 = scmp.eq.s32.totalorder %s21, 0
      %p137 = por %p135, %p136
      %s138 = ssub.s32 %s15, %s22
      %p139 = scmp.eq.s32.totalorder %s138, 0
      %s141 = sadd.s32 %s140, 1
      %s142 = scalar_select %p139, %s140, %s141
      %p145 = pneg %p139
      %p146 = scmp.eq.s32.totalorder %s15, 2
      %p147 = por %p145, %p146
      %p148 = scmp.ne.s32.totalorder %s140, %s143
      %p149 = scmp.eq.s32.totalorder %s15, 0
      %p150 = por %p148, %p149
      %p151 = scmp.ne.s32.totalorder %s140, %s143
      %p152 = scmp.eq.s32.totalorder %s20, 2
      %p153 = por %p151, %p152
      %p154 = scmp.ne.s32.totalorder %s143, %s144
      %p155 = scmp.eq.s32.totalorder %s20, 0
      %p156 = por %p154, %p155
      %p157 = scmp.ne.s32.totalorder %s143, %s144
      %p158 = scmp.eq.s32.totalorder %s21, 2
      %p159 = por %p157, %p158
      %p161 = scmp.ne.s32.totalorder %s144, %s160
      %p162 = scmp.eq.s32.totalorder %s21, 0
      %p163 = por %p161, %p162
      %p164 = scmp.le.s32.totalorder 1, %s15
      %p165 = scmp.lt.s32.totalorder %s15, 4
      %p166 = pnand %p164, %p165
      %p167 = pneg %p166
      // Predicated region
      $region9: #{tpu_custom_call.1} parent=5 // pred_check
        _
      $region10: #{tpu_custom_call.1} parent=5 // pred_check_branch
        %169 = sbr.rel (%p166) target = $region12
      $region11: #{tpu_custom_call.1} parent=5 // pred_region
        %s170 = ssub.s32 %s15, 1
        // Predicated region
        $region13: #{tpu_custom_call.1} parent=11 // pred_check
          %p171 = pneg %p62
        $region14: #{tpu_custom_call.1} parent=11 // pred_check_branch
          %173 = sbr.rel (%p171) target = $region16
        $region15: #{tpu_custom_call.1} parent=11 // pred_region
          _
        $region16: #{tpu_custom_call.1} parent=11 // pred_fallthru
          _
        // Predicated region
        $region17: #{tpu_custom_call.1} parent=11 // pred_check
          %p174 = pneg %p83
        $region18: #{tpu_custom_call.1} parent=11 // pred_check_branch
          %176 = sbr.rel (%p174) target = $region20
        $region19: #{tpu_custom_call.1} parent=11 // pred_region
          _
        $region20: #{tpu_custom_call.1} parent=11 // pred_fallthru
          _
        // Predicated region
        $region21: #{tpu_custom_call.1} parent=11 // pred_check
          %p177 = pneg %p104
        $region22: #{tpu_custom_call.1} parent=11 // pred_check_branch
          %179 = sbr.rel (%p177) target = $region24
        $region23: #{tpu_custom_call.1} parent=11 // pred_region
          _
        $region24: #{tpu_custom_call.1} parent=11 // pred_fallthru
          _
      $region12: #{tpu_custom_call.1} parent=5 // pred_fallthru
        _
      %p180 = scmp.lt.s32.totalorder %s15, 3
      // Predicated region
      $region25: #{tpu_custom_call.1} parent=5 // pred_check
        %p181 = pneg %p180
      $region26: #{tpu_custom_call.1} parent=5 // pred_check_branch
        %183 = sbr.rel (%p181) target = $region28
      $region27: #{tpu_custom_call.1} parent=5 // pred_region
        // Predicated region
        $region29: #{tpu_custom_call.1} parent=27 // pred_check
          %p184 = pneg %p35
        $region30: #{tpu_custom_call.1} parent=27 // pred_check_branch
          %186 = sbr.rel (%p184) target = $region32
        $region31: #{tpu_custom_call.1} parent=27 // pred_region
          %p187 = scmp.lt.s32.totalorder %s15, 2
          %s188 = scalar_select %p187, %s15, 2
          %s189 = smul.addr %s188, 8
          %s190 = scalar_lea.vmem %s0, %s189
        $region32: #{tpu_custom_call.1} parent=27 // pred_fallthru
          _
      $region28: #{tpu_custom_call.1} parent=5 // pred_fallthru
        _
      %p191 = scmp.le.s32.totalorder 1, %s15
      %p192 = scmp.lt.s32.totalorder %s15, 4
      %p193 = pnand %p191, %p192
      %p194 = pneg %p193
      // Predicated region
      $region33: #{tpu_custom_call.1} parent=5 // pred_check
        _
      $region34: #{tpu_custom_call.1} parent=5 // pred_check_branch
        %196 = sbr.rel (%p193) target = $region36
      $region35: #{tpu_custom_call.1} parent=5 // pred_region
        %s197 = ssub.s32 %s15, 1
        %p198 = scmp.lt.s32.totalorder %s20, 2
        %s199 = scalar_select %p198, %s20, 2
        %s200 = smul.addr %s199, 8
        %s201 = scalar_lea.vmem %s0, %s200
        %p202 = pneg %p41
        %p203 = pneg %p38
        %p204 = pneg %p62
        %p205 = pneg %p59
        %p206 = pneg %p83
        %p207 = pneg %p80
        %p208 = pneg %p104
        %p209 = pneg %p101
        %p210 = pneg %p130
        %p211 = pneg %p127
        %s212 = sand.u32 %s117, 1
        %s213 = scalar_lea.sflag [#allocation3], %s212
        %s214 = sand.u32 %s117, 1
        %s215 = smul.addr %s214, 8
        %s216 = scalar_lea.vmem [#allocation2], %s215
        %p217 = pneg %p156
        %p218 = pneg %p153
        %p219 = scmp.lt.s32.totalorder %s20, 2
        %s220 = scalar_select %p219, %s20, 2
        %s221 = smul.addr %s220, 8
        %s222 = scalar_lea.vmem %s5, %s221
        %p223 = scmp.lt.s32.totalorder %s20, 2
        %s224 = scalar_select %p223, %s20, 2
        %s225 = smul.addr %s224, 8
        %s226 = scalar_lea.vmem %s0, %s225
        %p227 = scmp.lt.s32.totalorder %s20, 2
        %s228 = scalar_select %p227, %s20, 2
        %s229 = smul.addr %s228, 8
        %s230 = scalar_lea.vmem %s5, %s229
        %v231 = vld [vmem:[%s226] sm:$0xff]
        %v232 = vld [vmem:[%s2] sm:$0xff]
        %v233 = vld [vmem:[%s2 + $0x8] sm:$0xff]
        %v234 = vld [vmem:[%s2 + $0x10] sm:$0xff]
        %v235 = vld [vmem:[%s2 + $0x18] sm:$0xff]
        %v236 = vld [vmem:[%s2 + $0x20] sm:$0xff]
        %v237 = vld [vmem:[%s2 + $0x28] sm:$0xff]
        %v238 = vld [vmem:[%s2 + $0x30] sm:$0xff]
        %v239 = vld [vmem:[%s2 + $0x38] sm:$0xff]
        %v240 = vld [vmem:[%s2 + $0x40] sm:$0xff]
        %v241 = vld [vmem:[%s2 + $0x48] sm:$0xff]
        %v242 = vld [vmem:[%s2 + $0x50] sm:$0xff]
        %v243 = vld [vmem:[%s2 + $0x58] sm:$0xff]
        %v244 = vld [vmem:[%s2 + $0x60] sm:$0xff]
        %v245 = vld [vmem:[%s2 + $0x68] sm:$0xff]
        %v246 = vld [vmem:[%s2 + $0x70] sm:$0xff]
        %v247 = vld [vmem:[%s2 + $0x78] sm:$0xff]
        %v248 = vld [vmem:[%s1] sm:$0x1]
        %v250 = vlaneseq
        %v251 = vshrl.u32 %v250, 7
        %v252 = vsub.s32 0, %v251
        %v253 = vrot.slane %v248, %v252
        %255 = vmatprep.subr.mxu0 0.0
        %256 = vmatpush1.msra.mxu0 %v247
        %257 = vmatprep.subr.mxu0 0.0
        %258 = vmatpush1.msra.mxu0 %v246
        %259 = vmatprep.subr.mxu0 0.0
        %260 = vmatpush1.msra.mxu0 %v245
        %261 = vmatprep.subr.mxu0 0.0
        %262 = vmatpush1.msra.mxu0 %v244
        %263 = vmatprep.subr.mxu0 0.0
        %264 = vmatpush1.msra.mxu0 %v243
        %265 = vmatprep.subr.mxu0 0.0
        %266 = vmatpush1.msra.mxu0 %v242
        %267 = vmatprep.subr.mxu0 0.0
        %268 = vmatpush1.msra.mxu0 %v241
        %269 = vmatprep.subr.mxu0 0.0
        %270 = vmatpush1.msra.mxu0 %v240
        %271 = vmatprep.subr.mxu0 0.0
        %272 = vmatpush1.msra.mxu0 %v239
        %273 = vmatprep.subr.mxu0 0.0
        %274 = vmatpush1.msra.mxu0 %v238
        %275 = vmatprep.subr.mxu0 0.0
        %276 = vmatpush1.msra.mxu0 %v237
        %277 = vmatprep.subr.mxu0 0.0
        %278 = vmatpush1.msra.mxu0 %v236
        %279 = vmatprep.subr.mxu0 0.0
        %280 = vmatpush1.msra.mxu0 %v235
        %281 = vmatprep.subr.mxu0 0.0
        %282 = vmatpush1.msra.mxu0 %v234
        %283 = vmatprep.subr.mxu0 0.0
        %284 = vmatpush1.msra.mxu0 %v233
        %285 = vmatprep.subr.mxu0 0.0
        %286 = vmatpush1.msra.mxu0 %v232
        %287 = vmatprep.subr.mxu0 0.0
        %288 = vmatpush2.msra.mxu0 0.0
        %289 = vmatprep.subr.mxu0 0.0
        %290 = vmatpush2.msra.mxu0 0.0
        %291 = vmatprep.subr.mxu0 0.0
        %292 = vmatpush2.msra.mxu0 0.0
        %293 = vmatprep.subr.mxu0 0.0
        %294 = vmatpush2.msra.mxu0 0.0
        %295 = vmatprep.subr.mxu0 0.0
        %296 = vmatpush2.msra.mxu0 0.0
        %297 = vmatprep.subr.mxu0 0.0
        %298 = vmatpush2.msra.mxu0 0.0
        %299 = vmatprep.subr.mxu0 0.0
        %300 = vmatpush2.msra.mxu0 0.0
        %301 = vmatprep.subr.mxu0 0.0
        %302 = vmatpush2.msra.mxu0 0.0
        %303 = vmatprep.subr.mxu0 0.0
        %304 = vmatpush2.msra.mxu0 0.0
        %305 = vmatprep.subr.mxu0 0.0
        %306 = vmatpush2.msra.mxu0 0.0
        %307 = vmatprep.subr.mxu0 0.0
        %308 = vmatpush2.msra.mxu0 0.0
        %309 = vmatprep.subr.mxu0 0.0
        %310 = vmatpush2.msra.mxu0 0.0
        %311 = vmatprep.subr.mxu0 0.0
        %312 = vmatpush2.msra.mxu0 0.0
        %313 = vmatprep.subr.mxu0 0.0
        %314 = vmatpush2.msra.mxu0 0.0
        %315 = vmatprep.subr.mxu0 0.0
        %316 = vmatpush2.msra.mxu0 0.0
        %317 = vmatprep.subr.mxu0 0.0
        %318 = vmatpush2.msra.mxu0 0.0
        %319 = vmatprep.mubr.f32.mxu0 0.0
        %320 = vmatmul.mubr.f32.gmra.mxu0 %v231
        %v321 = vpop.f32.mrf.mxu0
        %v322 = vadd.f32 %v253, %v321
        %v323 = vpop.f32.mrf.mxu0
        %324 = vdwg.mxu0
        %vm325 = vcmask 130048
        %v326 = vsel %vm325, %v322, -inf
        %327 = vmax.xlane.f32.xlu0 %v326
        %v328 = vpop.xlane.xlu0 %327
        %v329 = vlaneseq
        %v330 = vand.u32 %v329, 127
        %vm331 = vcmp.eq.f32.partialorder %v322, %v328
        %v332 = vsel %vm331, %v330, 16
        %v333 = vsel %vm325, %v332, 2147483647
        %v334 = vand.u32 %v333, 65535
        %v335 = vshra.s32 %v333, 16
        %v336 = vcvt.s32.f32 %v334
        %v337 = vcvt.s32.f32 %v335
        %338 = vmin.xlane.f32.xlu0 %v337
        %v339 = vpop.xlane.xlu0 %338
        %vm340 = vcmp.eq.f32.partialorder %v337, %v339
        %v341 = vsel %vm340, %v336, inf
        %342 = vmin.xlane.f32.xlu0 %v341
        %v343 = vpop.xlane.xlu0 %342
        %v344 = vcvt.f32.s32 %v343
        %v345 = vcvt.f32.s32 %v339
        %v346 = vshll.u32 %v345, 16
        %v347 = vadd.s32 %v346, %v344
        %vm348 = vcmask 7168
        %349 = vst.msk [vmem:[%s230] sm:$0xff] %vm348, %v347
        %vm350 = vcmp.eq.s32.totalorder %v330, %v347
        %v351 = vsel %vm350, 1, 0
        %v352 = vcvt.s32.f32 %v351
        %vm353 = vcmask 261248
        %v354 = vsel %vm353, %v322, -inf
        %355 = vmax.xlane.f32.xlu0 %v354
        %v356 = vpop.xlane.xlu0 %355
        %vm357 = vcmp.eq.f32.partialorder %v322, %v356
        %358 = vrot.lane.b32.xlu0 %v330, 16
        %v359 = vpop.permute.xlu0 %358
        %v360 = vsel %vm357, %v359, 16
        %v361 = vsel %vm353, %v360, 2147483647
        %v362 = vand.u32 %v361, 65535
        %v363 = vshra.s32 %v361, 16
        %v364 = vcvt.s32.f32 %v362
        %v365 = vcvt.s32.f32 %v363
        %366 = vmin.xlane.f32.xlu0 %v365
        %v367 = vpop.xlane.xlu0 %366
        %vm368 = vcmp.eq.f32.partialorder %v365, %v367
        %v369 = vsel %vm368, %v364, inf
        %370 = vmin.xlane.f32.xlu0 %v369
        %v371 = vpop.xlane.xlu0 %370
        %v372 = vcvt.f32.s32 %v371
        %v373 = vcvt.f32.s32 %v367
        %v374 = vshll.u32 %v373, 16
        %v375 = vadd.s32 %v374, %v372
        %vm376 = vcmask 15368
        %377 = vst.msk [vmem:[%s230] sm:$0xff] %vm376, %v375
        %vm378 = vcmp.eq.s32.totalorder %v330, %v375
        %v379 = vsel %vm378, 1, 0
        %v380 = vcvt.s32.f32 %v379
        %vm381 = vcmask 392448
        %v382 = vsel %vm381, %v322, -inf
        %383 = vmax.xlane.f32.xlu0 %v382
        %v384 = vpop.xlane.xlu0 %383
        %vm385 = vcmp.eq.f32.partialorder %v322, %v384
        %386 = vrot.lane.b32.xlu0 %v330, 32
        %v387 = vpop.permute.xlu0 %386
        %v388 = vsel %vm385, %v387, 16
        %v389 = vsel %vm381, %v388, 2147483647
        %v390 = vand.u32 %v389, 65535
        %v391 = vshra.s32 %v389, 16
        %v392 = vcvt.s32.f32 %v390
        %v393 = vcvt.s32.f32 %v391
        %394 = vmin.xlane.f32.xlu0 %v393
        %v395 = vpop.xlane.xlu0 %394
        %vm396 = vcmp.eq.f32.partialorder %v393, %v395
        %v397 = vsel %vm396, %v392, inf
        %398 = vmin.xlane.f32.xlu0 %v397
        %v399 = vpop.xlane.xlu0 %398
        %v400 = vcvt.f32.s32 %v399
        %v401 = vcvt.f32.s32 %v395
        %v402 = vshll.u32 %v401, 16
        %v403 = vadd.s32 %v402, %v400
        %vm404 = vcmask 23568
        %405 = vst.msk [vmem:[%s230] sm:$0xff] %vm404, %v403
        %vm406 = vcmp.eq.s32.totalorder %v330, %v403
        %v407 = vsel %vm406, 1, 0
        %v408 = vcvt.s32.f32 %v407
        %vm409 = vcmask 523648
        %v410 = vsel %vm409, %v322, -inf
        %411 = vmax.xlane.f32.xlu0 %v410
        %v412 = vpop.xlane.xlu0 %411
        %vm413 = vcmp.eq.f32.partialorder %v322, %v412
        %414 = vrot.lane.b32.xlu0 %v330, 48
        %v415 = vpop.permute.xlu0 %414
        %v416 = vsel %vm413, %v415, 16
        %v417 = vsel %vm409, %v416, 2147483647
        %v418 = vand.u32 %v417, 65535
        %v419 = vshra.s32 %v417, 16
        %v420 = vcvt.s32.f32 %v418
        %v421 = vcvt.s32.f32 %v419
        %422 = vmin.xlane.f32.xlu0 %v421
        %v423 = vpop.xlane.xlu0 %422
        %vm424 = vcmp.eq.f32.partialorder %v421, %v423
        %v425 = vsel %vm424, %v420, inf
        %426 = vmin.xlane.f32.xlu0 %v425
        %v427 = vpop.xlane.xlu0 %426
        %v428 = vcvt.f32.s32 %v427
        %v429 = vcvt.f32.s32 %v423
        %v430 = vshll.u32 %v429, 16
        %v431 = vadd.s32 %v430, %v428
        %vm432 = vcmask 31768
        %433 = vst.msk [vmem:[%s230] sm:$0xff] %vm432, %v431
        %vm434 = vcmp.eq.s32.totalorder %v330, %v431
        %v435 = vsel %vm434, 1, 0
        %v436 = vcvt.s32.f32 %v435
        %438 = vrot.lane.b32.xlu0 %v380, 16
        %v439 = vpop.permute.xlu0 %438
        %442 = vrot.lane.b32.xlu0 %v408, 32
        %v443 = vpop.permute.xlu0 %442
        %446 = vrot.lane.b32.xlu0 %v436, 48
        %v447 = vpop.permute.xlu0 %446
        %v449 = vsel %vm325, %v352, %v439
        %vm450 = vcmask 261120
        %v451 = vsel %vm450, %v449, %v443
        %vm452 = vcmask 392192
        %v453 = vsel %vm452, %v451, %v447
        %v454 = vld [vmem:[%s3] sm:$0xff]
        %v455 = vld [vmem:[%s3 + $0x8] sm:$0xff]
        %v456 = vld [vmem:[%s3 + $0x10] sm:$0xff]
        %v457 = vld [vmem:[%s3 + $0x18] sm:$0xff]
        %v458 = vld [vmem:[%s3 + $0x20] sm:$0xff]
        %v459 = vld [vmem:[%s3 + $0x28] sm:$0xff]
        %v460 = vld [vmem:[%s3 + $0x30] sm:$0xff]
        %v461 = vld [vmem:[%s3 + $0x38] sm:$0xff]
        %vm462 = vcmask 523264
        %v464 = vsel %vm462, %v453, 0
        %466 = vmatprep.subr.mxu0 0.0
        %467 = vmatpush1.msra.mxu0 0.0
        %468 = vmatprep.subr.mxu0 0.0
        %469 = vmatpush1.msra.mxu0 0.0
        %470 = vmatprep.subr.mxu0 0.0
        %471 = vmatpush1.msra.mxu0 0.0
        %472 = vmatprep.subr.mxu0 0.0
        %473 = vmatpush1.msra.mxu0 0.0
        %474 = vmatprep.subr.mxu0 0.0
        %475 = vmatpush1.msra.mxu0 0.0
        %476 = vmatprep.subr.mxu0 0.0
        %477 = vmatpush1.msra.mxu0 0.0
        %478 = vmatprep.subr.mxu0 0.0
        %479 = vmatpush1.msra.mxu0 0.0
        %480 = vmatprep.subr.mxu0 0.0
        %481 = vmatpush1.msra.mxu0 0.0
        %482 = vmatprep.subr.mxu0 0.0
        %483 = vmatpush1.msra.mxu0 %v461
        %484 = vmatprep.subr.mxu0 0.0
        %485 = vmatpush1.msra.mxu0 %v460
        %486 = vmatprep.subr.mxu0 0.0
        %487 = vmatpush1.msra.mxu0 %v459
        %488 = vmatprep.subr.mxu0 0.0
        %489 = vmatpush1.msra.mxu0 %v458
        %490 = vmatprep.subr.mxu0 0.0
        %491 = vmatpush1.msra.mxu0 %v457
        %492 = vmatprep.subr.mxu0 0.0
        %493 = vmatpush1.msra.mxu0 %v456
        %494 = vmatprep.subr.mxu0 0.0
        %495 = vmatpush1.msra.mxu0 %v455
        %496 = vmatprep.subr.mxu0 0.0
        %497 = vmatpush1.msra.mxu0 %v454
        %498 = vmatprep.subr.mxu0 0.0
        %499 = vmatpush2.msra.mxu0 0.0
        %500 = vmatprep.subr.mxu0 0.0
        %501 = vmatpush2.msra.mxu0 0.0
        %502 = vmatprep.subr.mxu0 0.0
        %503 = vmatpush2.msra.mxu0 0.0
        %504 = vmatprep.subr.mxu0 0.0
        %505 = vmatpush2.msra.mxu0 0.0
        %506 = vmatprep.subr.mxu0 0.0
        %507 = vmatpush2.msra.mxu0 0.0
        %508 = vmatprep.subr.mxu0 0.0
        %509 = vmatpush2.msra.mxu0 0.0
        %510 = vmatprep.subr.mxu0 0.0
        %511 = vmatpush2.msra.mxu0 0.0
        %512 = vmatprep.subr.mxu0 0.0
        %513 = vmatpush2.msra.mxu0 0.0
        %514 = vmatprep.subr.mxu0 0.0
        %515 = vmatpush2.msra.mxu0 0.0
        %516 = vmatprep.subr.mxu0 0.0
        %517 = vmatpush2.msra.mxu0 0.0
        %518 = vmatprep.subr.mxu0 0.0
        %519 = vmatpush2.msra.mxu0 0.0
        %520 = vmatprep.subr.mxu0 0.0
        %521 = vmatpush2.msra.mxu0 0.0
        %522 = vmatprep.subr.mxu0 0.0
        %523 = vmatpush2.msra.mxu0 0.0
        %524 = vmatprep.subr.mxu0 0.0
        %525 = vmatpush2.msra.mxu0 0.0
        %526 = vmatprep.subr.mxu0 0.0
        %527 = vmatpush2.msra.mxu0 0.0
        %528 = vmatprep.subr.mxu0 0.0
        %529 = vmatpush2.msra.mxu0 0.0
        %530 = vmatprep.mubr.f32.mxu0 0.0
        %531 = vmatmul.mubr.f32.gmra.mxu0 %v464
        %v532 = vpop.f32.mrf.mxu0
        %v533 = vadd.f32 0.0, %v532
        %v534 = vpop.f32.mrf.mxu0
        %535 = vdwg.mxu0
        %536 = vst [vmem:[%s216] sm:$0xff] %v533
        %s537 = sand.u32 %s117, 1
        %s538 = scalar_lea.sflag [#allocation3], %s537
        %s539 = sand.u32 %s117, 1
        %s540 = smul.addr %s539, 8
        %s541 = scalar_lea.vmem [#allocation2], %s540
        %p542 = scmp.lt.s32.totalorder %s20, 2
        %s543 = scalar_select %p542, %s20, 2
        %s544 = smul.addr %s543, 8
        %s545 = scalar_lea.vmem %s5, %s544
        // Predicated region
        $region37: #{tpu_custom_call.1} parent=35 // pred_check
          %p546 = pneg %p127
        $region38: #{tpu_custom_call.1} parent=35 // pred_check_branch
          %548 = sbr.rel (%p546) target = $region40
        $region39: #{tpu_custom_call.1} parent=35 // pred_region
          %s550 = ssub.s32 128, 128
          %551 = vsyncadd %s538, %s550
          %s552 = smul.addr %s20, 128
          %s553 = scalar_lea.hbm %s4, %s552
          %s555 = sshll.u32 %s541, 4
          %s556 = int_to_ptr.vmem [resolvable:$true] %s555
          %558 = dma.vmem_to_hbm [thread:$0]  %s556, 128, %s553, %s538
        $region40: #{tpu_custom_call.1} parent=35 // pred_fallthru
          _
        // Predicated region
        $region41: #{tpu_custom_call.1} parent=35 // pred_check
          %p559 = pneg %p153
        $region42: #{tpu_custom_call.1} parent=35 // pred_check_branch
          %561 = sbr.rel (%p559) target = $region44
        $region43: #{tpu_custom_call.1} parent=35 // pred_region
          _
        $region44: #{tpu_custom_call.1} parent=35 // pred_fallthru
          _
      $region36: #{tpu_custom_call.1} parent=5 // pred_fallthru
        _
      %p562 = scmp.le.s32.totalorder 2, %s15
      // Predicated region
      $region45: #{tpu_custom_call.1} parent=5 // pred_check
        %p563 = pneg %p562
      $region46: #{tpu_custom_call.1} parent=5 // pred_check_branch
        %565 = sbr.rel (%p563) target = $region48
      $region47: #{tpu_custom_call.1} parent=5 // pred_region
        %s566 = ssub.s32 %s15, 2
        // Predicated region
        $region49: #{tpu_custom_call.1} parent=47 // pred_check
          %p567 = pneg %p133
        $region50: #{tpu_custom_call.1} parent=47 // pred_check_branch
          %569 = sbr.rel (%p567) target = $region52
        $region51: #{tpu_custom_call.1} parent=47 // pred_region
          %s570 = sand.u32 %s118, 1
          %s571 = scalar_lea.sflag [#allocation3], %s570
          %s572 = sand.u32 %s118, 1
          %s573 = smul.addr %s572, 8
          %s574 = scalar_lea.vmem [#allocation2], %s573
          %575 = dma.done %s571, 128
        $region52: #{tpu_custom_call.1} parent=47 // pred_fallthru
          _
        // Predicated region
        $region53: #{tpu_custom_call.1} parent=47 // pred_check
          %p576 = pneg %p159
        $region54: #{tpu_custom_call.1} parent=47 // pred_check_branch
          %578 = sbr.rel (%p576) target = $region56
        $region55: #{tpu_custom_call.1} parent=47 // pred_region
          %p579 = scmp.lt.s32.totalorder %s21, 2
          %s580 = scalar_select %p579, %s21, 2
          %s581 = smul.addr %s580, 8
          %s582 = scalar_lea.vmem %s5, %s581
        $region56: #{tpu_custom_call.1} parent=47 // pred_fallthru
          _
      $region48: #{tpu_custom_call.1} parent=5 // pred_fallthru
        _
    $region6: #{tpu_custom_call.1} parent=1 // loop_footer
      %s19 = sadd.s32 1, %s15
    $region7: #{tpu_custom_call.1} parent=1 // loop_footer_branch
      %14 = sbr.rel target = $region3
    $region8: #{tpu_custom_call.1} parent=1 // loop_exit
      _
    %583 = vsyncpa [#allocation3], 1
    %s584 = scalar_lea.sflag [#allocation3], 1
    %585 = vsyncpa %s584, 1

</llo_original>
